<compile_context>
chip_gen: v7x
topology: tpu7x:2x2x1
jax: 0.10.0
libtpu: 0.0.40
codegen_flags: <defaults>
</compile_context>

<pallas_src>
import jax
import jax.numpy as jnp
from jax.experimental import pallas as pl
from jax.experimental.pallas import tpu as pltpu


def _identity_kernel(x_ref, o_ref):
    # nn.Identity: copy the current tile unchanged.
    o_ref[...] = x_ref[...]


_LANE_CANDIDATES = (2048, 1024, 512, 256, 128)  # lane-dense last-dim widths


def _sublane_multiple(dtype) -> int:
    """Packed sublane tile height for this dtype: 8 (f32), 16 (bf16), 32 (i8/fp8)."""
    itemsize = jnp.dtype(dtype).itemsize
    if itemsize >= 4:
        return 8
    if itemsize == 2:
        return 16
    return 32


def _vmem_budget():
    """(per_tile_bytes, vmem_limit_bytes) derived from this chip's VMEM capacity."""
    try:
        cap = int(pltpu.get_tpu_info().vmem_capacity_bytes)
    except Exception:
        cap = 64 * 1024 * 1024  # conservative: assume v7x-class 64 MiB per TC
    if cap >= 96 * 1024 * 1024:
        # v5e / v6e: 128 MiB physical VMEM -> bigger tiles amortize per-step overhead.
        return 8 * 1024 * 1024, 64 * 1024 * 1024
    # v7x: 64 MiB per TC -> keep 4 MiB-class tiles and the scoped limit modest.
    return 4 * 1024 * 1024, 32 * 1024 * 1024


def attention_forward(x: jax.Array) -> jax.Array:
    """Production path: Attention(name=None).forward(x) == nn.Identity()(x).

    Zero HBM traffic — do not route the model graph through the Pallas demo.
    """
    return x


def attention_forward_pallas(x: jax.Array) -> jax.Array:
    """Explicit Pallas identity-copy kernel (demonstration path only)."""
    total = int(x.size)
    if total == 0:
        return x

    dtype = x.dtype
    dsize = jnp.dtype(dtype).itemsize
    sub = _sublane_multiple(dtype)

    # Lane-dense (rows, K) view of the flat buffer: K a large multiple of 128,
    # rows a multiple of the packed sublane tile. No padding / slicing copies:
    # if no such factorization exists, fall back to the zero-cost identity.
    K = None
    for cand in _LANE_CANDIDATES:
        if total % cand == 0 and (total // cand) % sub == 0:
            K = cand
            break
    if K is None:
        return x
    rows = total // K
    x2d = x.reshape(rows, K)  # contiguous flat reshape, no relayout copy

    per_tile_bytes, vmem_limit = _vmem_budget()

    # Rows per tile, bounded by the per-buffer VMEM budget, multiple of `sub`.
    budget_rows = max(sub, (per_tile_bytes // (K * dsize)) // sub * sub)
    tile_rows = max(sub, min(rows, budget_rows))
    # Keep >= 2 grid steps when rows permit so the "parallel" axis can shard
    # across both v7x TensorCores (no-op on single-TC v5e/v6e).
    if rows >= 2 * sub:
        half_rows = ((rows + 1) // 2 + sub - 1) // sub * sub
        tile_rows = min(tile_rows, half_rows)
    tile_rows = max(sub, (tile_rows // sub) * sub)

    grid = (pl.cdiv(rows, tile_rows),)  # ragged last block is masked by Pallas

    def _run(in_spec):
        return pl.pallas_call(
            _identity_kernel,
            out_shape=jax.ShapeDtypeStruct((rows, K), dtype),
            grid_spec=pltpu.PrefetchScalarGridSpec(
                num_scalar_prefetch=0,
                grid=grid,
                in_specs=[in_spec],
                out_specs=pl.BlockSpec((tile_rows, K), lambda i: (i, 0)),
            ),
            compiler_params=pltpu.CompilerParams(
                dimension_semantics=("parallel",),
                vmem_limit_bytes=vmem_limit,
            ),
        )(x2d)

    # Pure-streaming copy: a 3rd input buffer hides DMA issue/complete jitter.
    # Fall back to default double-buffering if this build rejects pipeline_mode.
    try:
        out2d = _run(
            pl.BlockSpec((tile_rows, K), lambda i: (i, 0),
                         pipeline_mode=pl.Buffered(3))
        )
    except Exception:
        out2d = _run(pl.BlockSpec((tile_rows, K), lambda i: (i, 0)))

    return out2d.reshape(x.shape)


if __name__ == "__main__":
    key = jax.random.PRNGKey(0)
    x = jax.random.normal(key, (2, 4, 16, 16), dtype=jnp.float32)

    # Primary (zero-cost) identity path.
    y_fast = jax.block_until_ready(attention_forward(x))

    # Explicit Pallas kernel path (no aliasing/donation, so x stays valid).
    y_kernel = jax.block_until_ready(attention_forward_pallas(x))

    assert y_fast.shape == x.shape and y_fast.dtype == x.dtype
    assert y_kernel.shape == x.shape and y_kernel.dtype == x.dtype
    assert bool(jnp.array_equal(y_fast, x))
    assert bool(jnp.array_equal(y_kernel, x))

    print("KERNEL_OK")
</pallas_src>

<mosaic_0001>
module attributes {stable_mosaic.version = 11 : i64} {
  func.func @_identity_kernel(%arg0: i32, %arg1: memref<8x256xf32, #tpu.memory_space<vmem>>, %arg2: memref<8x256xf32, #tpu.memory_space<vmem>>) attributes {dimension_semantics = [#tpu.dimension_semantics<parallel>], iteration_bounds = array<i64: 1>, scalar_prefetch = 0 : i64, scratch_operands = 0 : i64, tpu.core_type = #tpu.core_type<tc>, window_params = [{transform_indices = @transform_0, window_bounds = array<i64: 8, 256>}, {transform_indices = @transform_1, window_bounds = array<i64: 8, 256>}]} {
    %c0 = arith.constant 0 : index
    %c0_0 = arith.constant 0 : index
    %0 = vector.load %arg1[%c0, %c0_0] : memref<8x256xf32, #tpu.memory_space<vmem>>, vector<8x256xf32>
    %c0_1 = arith.constant 0 : index
    %c0_2 = arith.constant 0 : index
    %1 = vector.load %arg2[%c0_1, %c0_2] : memref<8x256xf32, #tpu.memory_space<vmem>>, vector<8x256xf32>
    tpu.vector_store %arg2[%c0_1, %c0_2], %0 {strides = array<i32>} : memref<8x256xf32, #tpu.memory_space<vmem>>, vector<8x256xf32>,
    return
  }
  func.func @transform_0(%arg0: i32) -> (i32, i32) {
    %c0_i32 = arith.constant 0 : i32
    %c0_i32_0 = arith.constant 0 : i32
    return %arg0, %c0_i32 : i32, i32
  }
  func.func @transform_1(%arg0: i32) -> (i32, i32) {
    %c0_i32 = arith.constant 0 : i32
    %c0_i32_0 = arith.constant 0 : i32
    return %arg0, %c0_i32 : i32, i32
  }
}

</mosaic_0001>

<llo_original>
// kernel: tpu_custom_call.1
$region0: #{tpu_custom_call.1}
  #allocation0 [shape = 'u32[]', space=smem, size = 0x4, offset = 0x4, fixed_abs, tag = 'smem constant byte address 0x4 - core index']
  #allocation1 [shape = 'u32[144,128]{1,0:T(1,128)}', space=vmem, size = 0x12000, scoped, tag = 'internal scratch']
  %s0 = inlined_call_operand.hbm [shape: f32[8,256], index: 0, kind: input, shape index: {}]
  %s1 = inlined_call_operand.hbm [shape: f32[8,256], index: 1, kind: output, shape index: {}]
  %s2 = sld [smem:[#allocation0]]
  $region18: #{tpu_custom_call.1} parent=0
    _
  %s4 = ssub.s32 1, %s2
  %s5 = scalar_select 0, %s4, %s2
  $region1: #{tpu_custom_call.1} parent=0
    #allocation2 [shape = 'u8[8192]{0}', space=vmem, size = 0x2000, scoped, tag = 'input window, operand 0, single buffered']
    #allocation3 [shape = 's32[1]{0}', space=sflag, size = 0x4, scoped, tag = 'scoped memory for tpu_custom_call.1']
    #allocation4 [shape = 's32[1]{0}', space=sflag, size = 0x4, scoped, tag = 'scoped memory for tpu_custom_call.1']
    #allocation5 [shape = 'u8[8192]{0}', space=vmem, size = 0x2000, scoped, tag = 'output window, operand 0, single buffered']
    %6 = vsyncpa [#allocation3], 0
    %7 = vsyncpa [#allocation4], 0
    // Predicated region
    $region2: #{tpu_custom_call.1} parent=1 // pred_check
      _
    $region3: #{tpu_custom_call.1} parent=1 // pred_check_branch
      %9 = sbr.rel (0) target = $region5
    $region4: #{tpu_custom_call.1} parent=1 // pred_region
      %s11 = ssub.s32 256, 256
      %12 = vsyncadd [#allocation3], %s11
      %s14 = sshll.u32 [#allocation2], 4
      %s15 = int_to_ptr.vmem [resolvable:$true] %s14
      %17 = dma.hbm_to_vmem [thread:$0]  %s0, 256, %s15, [#allocation3]
    $region5: #{tpu_custom_call.1} parent=1 // pred_fallthru
      _
    // Predicated region
    $region6: #{tpu_custom_call.1} parent=1 // pred_check
      _
    $region7: #{tpu_custom_call.1} parent=1 // pred_check_branch
      %19 = sbr.rel (0) target = $region9
    $region8: #{tpu_custom_call.1} parent=1 // pred_region
      %20 = dma.done [#allocation3], 256
    $region9: #{tpu_custom_call.1} parent=1 // pred_fallthru
      _
    %v21 = vld [vmem:[#allocation2] sm:$0xff]
    %v22 = vld [vmem:[#allocation2 + $0x8] sm:$0xff]
    %23 = vst [vmem:[#allocation5] sm:$0xff] %v21
    %24 = vst [vmem:[#allocation5 + $0x8] sm:$0xff] %v22
    // Predicated region
    $region10: #{tpu_custom_call.1} parent=1 // pred_check
      _
    $region11: #{tpu_custom_call.1} parent=1 // pred_check_branch
      %26 = sbr.rel (0) target = $region13
    $region12: #{tpu_custom_call.1} parent=1 // pred_region
      %s28 = ssub.s32 256, 256
      %29 = vsyncadd [#allocation4], %s28
      %s31 = sshll.u32 [#allocation5], 4
      %s32 = int_to_ptr.vmem [resolvable:$true] %s31
      %34 = dma.vmem_to_hbm [thread:$0]  %s32, 256, %s1, [#allocation4]
    $region13: #{tpu_custom_call.1} parent=1 // pred_fallthru
      _
    // Predicated region
    $region14: #{tpu_custom_call.1} parent=1 // pred_check
      _
    $region15: #{tpu_custom_call.1} parent=1 // pred_check_branch
      %36 = sbr.rel (0) target = $region17
    $region16: #{tpu_custom_call.1} parent=1 // pred_region
      %37 = dma.done [#allocation4], 256
    $region17: #{tpu_custom_call.1} parent=1 // pred_fallthru
      _
    %38 = vsyncpa [#allocation3], 1
    %39 = vsyncpa [#allocation4], 1

</llo_original>
